<compile_context>
chip_gen: v7x
topology: tpu7x:2x2x1
jax: 0.10.0
libtpu: 0.0.40
codegen_flags: <defaults>
</compile_context>

<pallas_src>
import numpy as np
import jax
import jax.numpy as jnp
from jax.experimental import pallas as pl
from jax.experimental.pallas import tpu as pltpu

V_NUM = 3
_SIGMA_INIT = (1.0, 1.5, 0.5)

# Tile caps: f32 tiles of (256, 1024) = 1 MiB; (3 inputs + 1 output) x 2 buffers
# ~= 8 MiB, inside default scoped VMEM on v5e/v6e/v7x (and <16 MiB per core so
# both v7x TensorCores can run concurrently). 256 / 1024 are multiples of every
# dtype's sublane/lane tiling requirement.
_TM_MAX = 256
_TN_MAX = 1024


def _uncertainty_loss_kernel(params_ref, x0_ref, x1_ref, x2_ref, out_ref):
    # params_ref (SMEM): [w0, w1, w2, log_term], w_i = 1/(2*sigma_i^2),
    # log_term = log(prod(sigma^2)); precomputed once in the wrapper.
    w0 = params_ref[0]
    w1 = params_ref[1]
    w2 = params_ref[2]
    log_term = params_ref[3]

    # Accumulator starts from task 0 (no zeros materialization / extra add).
    acc = x0_ref[...].astype(jnp.float32) * w0
    acc = acc + x1_ref[...].astype(jnp.float32) * w1
    acc = acc + x2_ref[...].astype(jnp.float32) * w2
    out_ref[...] = (acc + log_term).astype(out_ref.dtype)


def uncertainty_loss(losses, sigma):
    """losses: list of V_NUM arrays (all the same shape); sigma: (3,) float."""
    assert len(losses) == V_NUM
    losses = [jnp.asarray(l) for l in losses]
    orig_shape = tuple(losses[0].shape)
    for l in losses:
        assert tuple(l.shape) == orig_shape, "all per-task losses must share one shape"

    sigma = jnp.asarray(sigma, jnp.float32)
    sigma2 = sigma * sigma
    weights = 0.5 / sigma2                      # 1 / (2 * sigma_i^2)
    log_term = jnp.log(jnp.prod(sigma2))        # log(prod(sigma^2))

    out_dtype = jnp.result_type(*losses)
    if not jnp.issubdtype(out_dtype, jnp.floating):
        out_dtype = jnp.float32

    # Fast path: canonical usage is three scalar losses; a Pallas launch would be
    # pure overhead, so let XLA fuse the handful of flops instead.
    if len(orig_shape) == 0:
        acc = (losses[0].astype(jnp.float32) * weights[0]
               + losses[1].astype(jnp.float32) * weights[1]
               + losses[2].astype(jnp.float32) * weights[2])
        return (acc + log_term).astype(out_dtype)

    # Flatten each per-task loss to a 2-D slab (lane axis = last dim).
    if len(orig_shape) == 1:
        shape2d = (1, int(orig_shape[0]))
    else:
        shape2d = (int(np.prod(orig_shape[:-1])), int(orig_shape[-1]))
    M, N = shape2d
    x0, x1, x2 = (l.reshape(shape2d) for l in losses)

    # (4,) f32 scalars -> SMEM.
    params = jnp.concatenate([weights, log_term[None]])

    # Tile sizes: full extent when the dim is small (always a legal block),
    # otherwise a large aligned tile; partial edge blocks are masked by Pallas.
    tm = M if M <= _TM_MAX else _TM_MAX
    tn = N if N <= _TN_MAX else _TN_MAX
    grid = (pl.cdiv(M, tm), pl.cdiv(N, tn))

    tile_spec = pl.BlockSpec((tm, tn), lambda i, j: (i, j))

    out2d = pl.pallas_call(
        _uncertainty_loss_kernel,
        out_shape=jax.ShapeDtypeStruct(shape2d, out_dtype),
        grid=grid,
        in_specs=[
            pl.BlockSpec(memory_space=pltpu.MemorySpace.SMEM),  # params (scalars)
            tile_spec,                                          # task-0 loss tile
            tile_spec,                                          # task-1 loss tile
            tile_spec,                                          # task-2 loss tile
        ],
        out_specs=tile_spec,
        compiler_params=pltpu.CompilerParams(
            dimension_semantics=("parallel", "parallel")),
    )(params, x0, x1, x2)

    return out2d.reshape(orig_shape)


def _reference(losses, sigma):
    sigma = jnp.asarray(sigma, jnp.float32)
    loss = 0.0
    for i in range(V_NUM):
        loss = loss + jnp.asarray(losses[i], jnp.float32) / (2.0 * sigma[i] ** 2)
    return loss + jnp.log(jnp.prod(sigma ** 2))


if __name__ == "__main__":
    key = jax.random.PRNGKey(0)
    k_scalar, k_bf16, k_f32 = jax.random.split(key, 3)

    # Deterministic parameter init, same as the module's __init__.
    sigma = jnp.array(_SIGMA_INIT, dtype=jnp.float32)

    # Case 1: typical usage — three scalar per-task losses (seg, cls, attn).
    #         Uses the plain-JAX fast path (no Pallas launch overhead).
    scalar_losses = [
        jax.random.uniform(jax.random.fold_in(k_scalar, i), (), jnp.float32) * 3.0
        for i in range(V_NUM)
    ]
    out_scalar = uncertainty_loss(scalar_losses, sigma)
    jax.block_until_ready(out_scalar)
    ref_scalar = _reference(scalar_losses, sigma)
    assert out_scalar.shape == scalar_losses[0].shape
    assert jnp.allclose(out_scalar, ref_scalar, rtol=1e-5, atol=1e-5)

    # Case 2: bf16 per-task loss maps (8, 256) — single full-array block,
    #         bf16 kept across HBM, f32 accumulation in-kernel, bf16 output.
    bf16_losses = [
        jax.random.normal(jax.random.fold_in(k_bf16, i), (8, 256), jnp.bfloat16)
        for i in range(V_NUM)
    ]
    out_bf16 = uncertainty_loss(bf16_losses, sigma)
    jax.block_until_ready(out_bf16)
    ref_bf16 = _reference(bf16_losses, sigma)
    assert out_bf16.shape == bf16_losses[0].shape
    assert out_bf16.dtype == jnp.bfloat16
    assert jnp.allclose(out_bf16.astype(jnp.float32), ref_bf16, rtol=2e-2, atol=2e-2)

    # Case 3: f32 per-task loss maps (512, 384) — exercises a real 2-tile grid.
    f32_losses = [
        jax.random.normal(jax.random.fold_in(k_f32, i), (512, 384), jnp.float32)
        for i in range(V_NUM)
    ]
    out_f32 = uncertainty_loss(f32_losses, sigma)
    jax.block_until_ready(out_f32)
    ref_f32 = _reference(f32_losses, sigma)
    assert out_f32.shape == f32_losses[0].shape
    assert jnp.allclose(out_f32, ref_f32, rtol=1e-5, atol=1e-5)

    print("KERNEL_OK")
</pallas_src>

<mosaic_0001>
module attributes {stable_mosaic.version = 11 : i64} {
  func.func @_uncertainty_loss_kernel(%arg0: i32, %arg1: i32, %arg2: memref<4xf32, #tpu.memory_space<smem>>, %arg3: memref<8x256xbf16, #tpu.memory_space<vmem>>, %arg4: memref<8x256xbf16, #tpu.memory_space<vmem>>, %arg5: memref<8x256xbf16, #tpu.memory_space<vmem>>, %arg6: memref<8x256xbf16, #tpu.memory_space<vmem>>) attributes {dimension_semantics = [#tpu.dimension_semantics<parallel>, #tpu.dimension_semantics<parallel>], iteration_bounds = array<i64: 1, 1>, scalar_prefetch = 0 : i64, scratch_operands = 0 : i64, tpu.core_type = #tpu.core_type<tc>, window_params = [{transform_indices = @transform_0, window_bounds = array<i64: 4>}, {transform_indices = @transform_1, window_bounds = array<i64: 8, 256>}, {transform_indices = @transform_2, window_bounds = array<i64: 8, 256>}, {transform_indices = @transform_3, window_bounds = array<i64: 8, 256>}, {transform_indices = @transform_4, window_bounds = array<i64: 8, 256>}]} {
    %c0 = arith.constant 0 : index
    %0 = memref.load %arg2[%c0] : memref<4xf32, #tpu.memory_space<smem>>
    %c1 = arith.constant 1 : index
    %1 = memref.load %arg2[%c1] : memref<4xf32, #tpu.memory_space<smem>>
    %c2 = arith.constant 2 : index
    %2 = memref.load %arg2[%c2] : memref<4xf32, #tpu.memory_space<smem>>
    %c3 = arith.constant 3 : index
    %3 = memref.load %arg2[%c3] : memref<4xf32, #tpu.memory_space<smem>>
    %c0_0 = arith.constant 0 : index
    %c0_1 = arith.constant 0 : index
    %4 = vector.load %arg3[%c0_0, %c0_1] : memref<8x256xbf16, #tpu.memory_space<vmem>>, vector<8x256xbf16>
    %5 = arith.extf %4 : vector<8x256xbf16> to vector<8x256xf32>
    %6 = vector.broadcast %0 : f32 to vector<8x256xf32>
    %7 = arith.mulf %5, %6 : vector<8x256xf32>
    %c0_2 = arith.constant 0 : index
    %c0_3 = arith.constant 0 : index
    %8 = vector.load %arg4[%c0_2, %c0_3] : memref<8x256xbf16, #tpu.memory_space<vmem>>, vector<8x256xbf16>
    %9 = arith.extf %8 : vector<8x256xbf16> to vector<8x256xf32>
    %10 = vector.broadcast %1 : f32 to vector<8x256xf32>
    %11 = arith.mulf %9, %10 : vector<8x256xf32>
    %12 = arith.addf %7, %11 : vector<8x256xf32>
    %c0_4 = arith.constant 0 : index
    %c0_5 = arith.constant 0 : index
    %13 = vector.load %arg5[%c0_4, %c0_5] : memref<8x256xbf16, #tpu.memory_space<vmem>>, vector<8x256xbf16>
    %14 = arith.extf %13 : vector<8x256xbf16> to vector<8x256xf32>
    %15 = vector.broadcast %2 : f32 to vector<8x256xf32>
    %16 = arith.mulf %14, %15 : vector<8x256xf32>
    %17 = arith.addf %12, %16 : vector<8x256xf32>
    %18 = vector.broadcast %3 : f32 to vector<8x256xf32>
    %19 = arith.addf %17, %18 : vector<8x256xf32>
    %20 = arith.truncf %19 : vector<8x256xf32> to vector<8x256xbf16>
    %c0_6 = arith.constant 0 : index
    %c0_7 = arith.constant 0 : index
    %21 = vector.load %arg6[%c0_6, %c0_7] : memref<8x256xbf16, #tpu.memory_space<vmem>>, vector<8x256xbf16>
    tpu.vector_store %arg6[%c0_6, %c0_7], %20 {strides = array<i32>} : memref<8x256xbf16, #tpu.memory_space<vmem>>, vector<8x256xbf16>,
    return
  }
  func.func @transform_0(%arg0: i32, %arg1: i32) -> i32 {
    %c0_i32 = arith.constant 0 : i32
    %c0_i32_0 = arith.constant 0 : i32
    return %c0_i32 : i32
  }
  func.func @transform_1(%arg0: i32, %arg1: i32) -> (i32, i32) {
    %c0_i32 = arith.constant 0 : i32
    return %arg0, %arg1 : i32, i32
  }
  func.func @transform_2(%arg0: i32, %arg1: i32) -> (i32, i32) {
    %c0_i32 = arith.constant 0 : i32
    return %arg0, %arg1 : i32, i32
  }
  func.func @transform_3(%arg0: i32, %arg1: i32) -> (i32, i32) {
    %c0_i32 = arith.constant 0 : i32
    return %arg0, %arg1 : i32, i32
  }
  func.func @transform_4(%arg0: i32, %arg1: i32) -> (i32, i32) {
    %c0_i32 = arith.constant 0 : i32
    return %arg0, %arg1 : i32, i32
  }
}

</mosaic_0001>

<llo_original>
// kernel: tpu_custom_call.1
$region0: #{tpu_custom_call.1}
  #allocation0 [shape = 'u32[]', space=smem, size = 0x4, offset = 0x4, fixed_abs, tag = 'smem constant byte address 0x4 - core index']
  #allocation1 [shape = 'u32[144,128]{1,0:T(1,128)}', space=vmem, size = 0x12000, scoped, tag = 'internal scratch']
  %s0 = inlined_call_operand.hbm [shape: f32[4], index: 0, kind: input, shape index: {}]
  %s1 = inlined_call_operand.hbm [shape: bf16[8,256], index: 1, kind: input, shape index: {}]
  %s2 = inlined_call_operand.hbm [shape: bf16[8,256], index: 2, kind: input, shape index: {}]
  %s3 = inlined_call_operand.vmem [shape: bf16[8,256], index: 3, kind: input, shape index: {}]
  %s4 = inlined_call_operand.hbm [shape: bf16[8,256], index: 4, kind: output, shape index: {}]
  %s5 = sld [smem:[#allocation0]]
  $region38: #{tpu_custom_call.1} parent=0
    _
  %s7 = ssub.s32 1, %s5
  %s8 = scalar_select 0, %s7, %s5
  $region1: #{tpu_custom_call.1} parent=0
    #allocation2 [shape = 'u8[512]{0}', space=smem, size = 0x200, scoped, tag = 'input window, operand 0, single buffered']
    #allocation3 [shape = 's32[1]{0}', space=sflag, size = 0x4, scoped, tag = 'scoped memory for tpu_custom_call.1']
    #allocation4 [shape = 's32[1]{0}', space=sflag, size = 0x4, scoped, tag = 'scoped memory for tpu_custom_call.1']
    #allocation5 [shape = 's32[1]{0}', space=sflag, size = 0x4, scoped, tag = 'scoped memory for tpu_custom_call.1']
    #allocation6 [shape = 'u8[4096]{0}', space=vmem, size = 0x1000, scoped, tag = 'input window, operand 1, single buffered']
    #allocation7 [shape = 'u8[4096]{0}', space=vmem, size = 0x1000, scoped, tag = 'input window, operand 2, single buffered']
    #allocation8 [shape = 's32[1]{0}', space=sflag, size = 0x4, scoped, tag = 'scoped memory for tpu_custom_call.1']
    #allocation9 [shape = 'u8[4096]{0}', space=vmem, size = 0x1000, scoped, tag = 'output window, operand 0, single buffered']
    %9 = vsyncpa [#allocation5], 0
    %10 = vsyncpa [#allocation3], 0
    %11 = vsyncpa [#allocation8], 0
    %12 = vsyncpa [#allocation4], 0
    // Predicated region
    $region2: #{tpu_custom_call.1} parent=1 // pred_check
      _
    $region3: #{tpu_custom_call.1} parent=1 // pred_check_branch
      %14 = sbr.rel (0) target = $region5
    $region4: #{tpu_custom_call.1} parent=1 // pred_region
      %s16 = ssub.s32 16, 16
      %17 = vsyncadd [#allocation5], %s16
      %20 = dma.hbm_to_smem %s0, 16, [#allocation2], [#allocation5]
    $region5: #{tpu_custom_call.1} parent=1 // pred_fallthru
      _
    // Predicated region
    $region6: #{tpu_custom_call.1} parent=1 // pred_check
      _
    $region7: #{tpu_custom_call.1} parent=1 // pred_check_branch
      %22 = sbr.rel (0) target = $region9
    $region8: #{tpu_custom_call.1} parent=1 // pred_region
      %s24 = ssub.s32 128, 128
      %25 = vsyncadd [#allocation3], %s24
      %s27 = sshll.u32 [#allocation6], 4
      %s28 = int_to_ptr.vmem [resolvable:$true] %s27
      %30 = dma.hbm_to_vmem [thread:$0]  %s1, 128, %s28, [#allocation3]
    $region9: #{tpu_custom_call.1} parent=1 // pred_fallthru
      _
    // Predicated region
    $region10: #{tpu_custom_call.1} parent=1 // pred_check
      _
    $region11: #{tpu_custom_call.1} parent=1 // pred_check_branch
      %32 = sbr.rel (0) target = $region13
    $region12: #{tpu_custom_call.1} parent=1 // pred_region
      %s34 = ssub.s32 128, 128
      %35 = vsyncadd [#allocation8], %s34
      %s37 = sshll.u32 [#allocation7], 4
      %s38 = int_to_ptr.vmem [resolvable:$true] %s37
      %40 = dma.hbm_to_vmem [thread:$0]  %s2, 128, %s38, [#allocation8]
    $region13: #{tpu_custom_call.1} parent=1 // pred_fallthru
      _
    // Predicated region
    $region14: #{tpu_custom_call.1} parent=1 // pred_check
      _
    $region15: #{tpu_custom_call.1} parent=1 // pred_check_branch
      %42 = sbr.rel (0) target = $region17
    $region16: #{tpu_custom_call.1} parent=1 // pred_region
      _
    $region17: #{tpu_custom_call.1} parent=1 // pred_fallthru
      _
    // Predicated region
    $region18: #{tpu_custom_call.1} parent=1 // pred_check
      _
    $region19: #{tpu_custom_call.1} parent=1 // pred_check_branch
      %44 = sbr.rel (0) target = $region21
    $region20: #{tpu_custom_call.1} parent=1 // pred_region
      %45 = dma.done [#allocation5], 16
    $region21: #{tpu_custom_call.1} parent=1 // pred_fallthru
      _
    // Predicated region
    $region22: #{tpu_custom_call.1} parent=1 // pred_check
      _
    $region23: #{tpu_custom_call.1} parent=1 // pred_check_branch
      %47 = sbr.rel (0) target = $region25
    $region24: #{tpu_custom_call.1} parent=1 // pred_region
      %48 = dma.done [#allocation3], 128
    $region25: #{tpu_custom_call.1} parent=1 // pred_fallthru
      _
    // Predicated region
    $region26: #{tpu_custom_call.1} parent=1 // pred_check
      _
    $region27: #{tpu_custom_call.1} parent=1 // pred_check_branch
      %50 = sbr.rel (0) target = $region29
    $region28: #{tpu_custom_call.1} parent=1 // pred_region
      %51 = dma.done [#allocation8], 128
    $region29: #{tpu_custom_call.1} parent=1 // pred_fallthru
      _
    %52 = sfence
    %s53 = sld [smem:[#allocation2]]
    %s54 = sld [smem:[#allocation2 + $0x1]]
    %s55 = sld [smem:[#allocation2 + $0x2]]
    %s56 = sld [smem:[#allocation2 + $0x3]]
    %v57 = vld [vmem:[#allocation6] sm:$0xff]
    %v58 = vunpack.c.l.bf16 %v57
    %v59 = vunpack.c.h.bf16 %v57
    %v60 = vstv %s53
    %v61 = vmul.f32 %v58, %v60
    %v62 = vmul.f32 %v59, %v60
    %v63 = vld [vmem:[#allocation7] sm:$0xff]
    %v64 = vunpack.c.l.bf16 %v63
    %v65 = vunpack.c.h.bf16 %v63
    %v66 = vstv %s54
    %v67 = vmul.f32 %v64, %v66
    %v68 = vmul.f32 %v65, %v66
    %v69 = vadd.f32 %v61, %v67
    %v70 = vadd.f32 %v62, %v68
    %v71 = vld [vmem:[%s3] sm:$0xff]
    %v72 = vunpack.c.l.bf16 %v71
    %v73 = vunpack.c.h.bf16 %v71
    %v74 = vstv %s55
    %v75 = vmul.f32 %v72, %v74
    %v76 = vmul.f32 %v73, %v74
    %v77 = vadd.f32 %v69, %v75
    %v78 = vadd.f32 %v70, %v76
    %v79 = vstv %s56
    %v80 = vadd.f32 %v77, %v79
    %v81 = vadd.f32 %v78, %v79
    %v82 = vpack.c.bf16 %v80, %v80
    %v83 = vpack.c.bf16 %v81, %v81
    %v86 = vunpack.c.l.b16 %v82
    %v87 = vunpack.c.l.b16 %v83
    %v88 = vpack.c.b16 %v87, %v86
    %90 = vst [vmem:[#allocation9] sm:$0xff] %v88
    // Predicated region
    $region30: #{tpu_custom_call.1} parent=1 // pred_check
      _
    $region31: #{tpu_custom_call.1} parent=1 // pred_check_branch
      %92 = sbr.rel (0) target = $region33
    $region32: #{tpu_custom_call.1} parent=1 // pred_region
      %s94 = ssub.s32 128, 128
      %95 = vsyncadd [#allocation4], %s94
      %s97 = sshll.u32 [#allocation9], 4
      %s98 = int_to_ptr.vmem [resolvable:$true] %s97
      %100 = dma.vmem_to_hbm [thread:$0]  %s98, 128, %s4, [#allocation4]
    $region33: #{tpu_custom_call.1} parent=1 // pred_fallthru
      _
    // Predicated region
    $region34: #{tpu_custom_call.1} parent=1 // pred_check
      _
    $region35: #{tpu_custom_call.1} parent=1 // pred_check_branch
      %102 = sbr.rel (0) target = $region37
    $region36: #{tpu_custom_call.1} parent=1 // pred_region
      %103 = dma.done [#allocation4], 128
    $region37: #{tpu_custom_call.1} parent=1 // pred_fallthru
      _
    %104 = vsyncpa [#allocation3], 1
    %105 = vsyncpa [#allocation8], 1
    %106 = vsyncpa [#allocation4], 1
    %107 = vsyncpa [#allocation5], 1

</llo_original>
